<compile_context>
chip_gen: v7x
topology: tpu7x:2x2x1
jax: 0.10.0
libtpu: 0.0.40
codegen_flags: <defaults>
</compile_context>

<pallas_src>
import jax
import jax.numpy as jnp
import numpy as np
from jax.experimental import pallas as pl
from jax.experimental.pallas import tpu as pltpu


def _dma_copy_kernel(x_hbm, o_hbm, sem):
    # Single whole-array HBM->HBM DMA: no VMEM staging, no vld/vst, no grid.
    cp = pltpu.make_async_copy(x_hbm, o_hbm, sem)
    cp.start()
    cp.wait()


def _alias_noop_kernel(x_hbm, o_hbm):
    # Output buffer aliases the input buffer: the data is already in place.
    # touch() pins a read+write dependency so the aliased output is treated
    # as produced by this kernel; no data movement is emitted.
    del x_hbm
    pltpu.touch(o_hbm)


def slice_whole_tensor(x: jax.Array, *, donate: bool = False) -> jax.Array:
    """Equivalent of `x[:, :]` for a 2-D tensor (whole-tensor slice).

    donate=False (default): materialized copy via a single HBM->HBM DMA.
    donate=True: zero-traffic identity via input/output buffer aliasing.
                 Only use when the caller will not reuse `x` afterwards.
    """
    assert x.ndim == 2, x.shape
    out_shape = jax.ShapeDtypeStruct(x.shape, x.dtype)

    if donate:
        # Top-ranked review suggestion: alias input to output, no-op body.
        return pl.pallas_call(
            _alias_noop_kernel,
            out_shape=out_shape,
            in_specs=[pl.BlockSpec(memory_space=pl.ANY)],
            out_specs=pl.BlockSpec(memory_space=pl.ANY),
            input_output_aliases={0: 0},
        )(x)

    # Materialized copy: one DMA, refs stay in HBM (pl.ANY), a scalar DMA
    # completion semaphore as scratch.
    return pl.pallas_call(
        _dma_copy_kernel,
        out_shape=out_shape,
        in_specs=[pl.BlockSpec(memory_space=pl.ANY)],
        out_specs=pl.BlockSpec(memory_space=pl.ANY),
        scratch_shapes=[pltpu.SemaphoreType.DMA(())],
    )(x)


if __name__ == "__main__":
    # Shape mirrors the torch-mlir e2e test for SliceWholeTensorModule: [6, 8] f32.
    key = jax.random.PRNGKey(0)
    x = jax.random.normal(key, (6, 8), dtype=jnp.float32)
    ref = np.asarray(x[:, :])  # host-side reference snapshot

    out = jax.block_until_ready(slice_whole_tensor(x))
    assert out.shape == x.shape and out.dtype == x.dtype
    assert np.array_equal(np.asarray(out), ref), "mismatch vs reference (6x8)"

    # A second, slightly larger (still small) shape to exercise the DMA copy
    # on a non-trivial, lane-aligned size as well.
    x2 = jax.random.normal(jax.random.PRNGKey(0), (256, 512), dtype=jnp.float32)
    ref2 = np.asarray(x2[:, :])
    out2 = jax.block_until_ready(slice_whole_tensor(x2))
    assert np.array_equal(np.asarray(out2), ref2), "mismatch vs reference (256x512)"

    print("KERNEL_OK")
</pallas_src>

<mosaic_0001>
module attributes {stable_mosaic.version = 11 : i64} {
  func.func @_dma_copy_kernel(%arg0: memref<6x8xf32, #tpu.memory_space<any>>, %arg1: memref<6x8xf32, #tpu.memory_space<any>>, %arg2: memref<!tpu.dma_semaphore, #tpu.memory_space<semaphore_mem>>) attributes {dimension_semantics = [], scalar_prefetch = 0 : i64, scratch_operands = 1 : i64, tpu.core_type = #tpu.core_type<tc>} {
    tpu.enqueue_dma source(%arg0 : memref<6x8xf32, #tpu.memory_space<any>>) target(%arg1 : memref<6x8xf32, #tpu.memory_space<any>>) target_semaphore(%arg2 : memref<!tpu.dma_semaphore, #tpu.memory_space<semaphore_mem>>)
    tpu.wait_dma2 semaphore(%arg2 : memref<!tpu.dma_semaphore, #tpu.memory_space<semaphore_mem>>) src(%arg0 : memref<6x8xf32, #tpu.memory_space<any>>) dst(%arg1 : memref<6x8xf32, #tpu.memory_space<any>>)
    return
  }
}

</mosaic_0001>

<llo_original>
// kernel: tpu_custom_call.1
$region0: #{tpu_custom_call.1}
  #allocation0 [shape = 'u32[]', space=smem, size = 0x4, offset = 0x4, fixed_abs, tag = 'smem constant byte address 0x4 - core index']
  #allocation1 [shape = 'u32[144,128]{1,0:T(1,128)}', space=vmem, size = 0x12000, scoped, tag = 'internal scratch']
  #allocation2 [shape = 's32[1]{0}', space=sflag, size = 0x4, scoped, tag = 'scratch operand']
  #allocation3 [shape = 's32[]', space=sflag, size = 0x4, offset = 0, fixed_abs, tag = 'sflag constant byte address 0x0 - dummy sync flag']
  #allocation4 [shape = 'u32[0]{0}', space=smem, size = 0, offset = 0, fixed_abs, tag = 'smem constant byte address 0x0 - null']
  %s0 = inlined_call_operand.hbm [shape: f32[6,8], index: 0, kind: input, shape index: {}]
  %s1 = inlined_call_operand.hbm [shape: f32[6,8], index: 1, kind: output, shape index: {}]
  %s2 = sld [smem:[#allocation0]]
  $region2: #{tpu_custom_call.1} parent=0
    _
  %s4 = ssub.s32 1, %s2
  %s5 = scalar_select 0, %s4, %s2
  %s7 = sshll.u32 1, 14
  %s8 = sxor.u32 4294967295, %s7
  %s11 = sshll.u32 3, 24
  %s12 = sxor.u32 4294967295, %s11
  %s13 = sand.u32 0, %s12
  %s15 = sor.u32 %s13, 0
  %18 = dma.general %s0, 96, %s1, [#allocation2], [#allocation3], [#allocation4], %s15, 0
  %s19 = smul.u32 6, 1
  %s20 = sshll.u32 %s19, 4
  %21 = dma.done [#allocation2], %s20
  %22 = vsyncmov [#allocation2]
  %s23 = vpop.sfrf %22
  %p24 = scmp.eq.s32.totalorder %s23, 0
  %p25 = pneg %p24
  %27 = shalt.err (%p25)

</llo_original>
